<compile_context>
chip_gen: v5e
topology: v5e:2x2
jax: 0.10.0
libtpu: 0.0.40
codegen_flags: <defaults>
</compile_context>

<pallas_src>
import math
import jax
import jax.numpy as jnp
from jax import lax
from jax.experimental import pallas as pl
from jax.experimental.pallas import tpu as pltpu


# -----------------------------------------------------------------------------
# Fused kernel: one-hot gate-table matmul + full-sequence LSTM recurrence
# (in-kernel fori_loop) + decoder Linear. Gate order matches nn.LSTM: [i,f,g,o].
# -----------------------------------------------------------------------------
def char_lm_kernel(chars_ref, tab_ref, whh_ref, lens_ref, h0_ref, c0_ref,
                   dw_ref, db_ref,
                   out_ref, hn_ref, cn_ref, dec_ref,
                   gx_ref, hs_ref):
    B, T, H = out_ref.shape
    Vtab = tab_ref.shape[0]
    Vp = dw_ref.shape[-1]
    TB = T * B

    # ---- hoisted (off the serial path) --------------------------------------
    # one_hot(chars) @ gate_table -> per-token input contribution to all 4 gates
    # (embedding + W_ih + bias folded in the wrapper; i/f/o columns pre-scaled by
    # 0.5 for the single-tanh trick). Stored time-major so the per-step read is a
    # dense contiguous [B, 4H] slab.
    char_ids = chars_ref[...]                                        # [T*B, 1] int32
    vlane = lax.broadcasted_iota(jnp.int32, (TB, Vtab), 1)
    onehot = (vlane == char_ids).astype(jnp.float32)                 # [T*B, V]
    gx_ref[...] = jnp.dot(onehot, tab_ref[...],
                          preferred_element_type=jnp.float32)        # [T*B, 4H]

    w_hh = whh_ref[...]                                              # [H, 4H]
    lens = lens_ref[...]                                             # [B, 1] int32
    h0 = jnp.broadcast_to(h0_ref[...], (B, H))                       # [1,H] -> [B,H]
    c0 = jnp.broadcast_to(c0_ref[...], (B, H))

    # Hoisted lane masks: sigmoid(z) = 0.5*tanh(z/2) + 0.5 on i/f/o lanes,
    # plain tanh on g lanes (the /2 pre-scale already lives in the weights).
    lane4 = lax.broadcasted_iota(jnp.int32, (B, 4 * H), 1)
    is_g = jnp.logical_and(lane4 >= 2 * H, lane4 < 3 * H)
    post_mul = jnp.where(is_g, 1.0, 0.5).astype(jnp.float32)
    post_add = jnp.where(is_g, 0.0, 0.5).astype(jnp.float32)

    def step(t, carry):
        h_prev, c_prev = carry
        row = pl.multiple_of(t * B, B)
        gx_t = gx_ref[pl.ds(row, B), :]                              # [B, 4H] dense
        gates = gx_t + jnp.dot(h_prev, w_hh,
                               preferred_element_type=jnp.float32)   # [B,H]@[H,4H]

        act = jnp.tanh(gates) * post_mul + post_add                  # single EUP pass
        i_g = act[:, 0 * H:1 * H]
        f_g = act[:, 1 * H:2 * H]
        g_g = act[:, 2 * H:3 * H]
        o_g = act[:, 3 * H:4 * H]

        c_new = f_g * c_prev + i_g * g_g
        h_new = o_g * jnp.tanh(c_new)

        valid = t < lens                                             # [B, 1] bool
        # Dense time-major store (contiguous sublanes), not a strided write to out.
        hs_ref[pl.ds(row, B), :] = jnp.where(valid, h_new, 0.0)
        return (jnp.where(valid, h_new, h_prev),
                jnp.where(valid, c_new, c_prev))

    h_fin, c_fin = lax.fori_loop(0, T, step, (h0, c0),
                                 unroll=True if T <= 16 else 4)
    hn_ref[...] = h_fin
    cn_ref[...] = c_fin

    # ---- epilogue: one layout fixup + fused decoder -------------------------
    # Time-major hs -> batch-major via strided sublane reads, then one dense
    # store for `output` and one [B*T, H] @ [H, 128] matmul (lane-dense store).
    rows = [hs_ref[pl.ds(b, T, stride=B), :] for b in range(B)]      # each [T, H]
    out_bm = jnp.concatenate(rows, axis=0)                           # [B*T, H] b-major
    out_ref[...] = out_bm.reshape(B, T, H)
    dec = jnp.dot(out_bm, dw_ref[...],
                  preferred_element_type=jnp.float32) + db_ref[...]  # [B*T, 128]
    dec_ref[...] = dec.reshape(B, T, Vp)


def run_char_lm(chars_tm, gate_tab, w_hh_s, lens_b1, h0, c0, dec_w_p, dec_b_p, B, T):
    H = w_hh_s.shape[0]
    Vp = dec_w_p.shape[-1]
    vmem = pl.BlockSpec(memory_space=pltpu.MemorySpace.VMEM)
    return pl.pallas_call(
        char_lm_kernel,
        out_shape=(
            jax.ShapeDtypeStruct((B, T, H), jnp.float32),    # output (zero-padded)
            jax.ShapeDtypeStruct((B, H), jnp.float32),       # h_n
            jax.ShapeDtypeStruct((B, H), jnp.float32),       # c_n
            jax.ShapeDtypeStruct((B, T, Vp), jnp.float32),   # decoded (lane-padded)
        ),
        in_specs=[vmem] * 8,
        out_specs=(vmem, vmem, vmem, vmem),
        scratch_shapes=[
            pltpu.VMEM((T * B, 4 * H), jnp.float32),   # gx: per-token gate inputs (time-major)
            pltpu.VMEM((T * B, H), jnp.float32),       # hs: hidden states (time-major)
        ],
    )(chars_tm, gate_tab, w_hh_s, lens_b1, h0, c0, dec_w_p, dec_b_p)


# -----------------------------------------------------------------------------
# CharacterLanguageModel.forward equivalent (eval mode, hidden=None path).
# -----------------------------------------------------------------------------
def character_language_model_forward(params, chars, charlens):
    # chars: [B, T] int32; charlens: [B] int32 (sorted desc, pack_padded_sequence)
    B, T = chars.shape
    H = params["w_hh"].shape[0]
    V = params["dec_w"].shape[-1]
    Vp = ((V + 127) // 128) * 128                      # lane-dense decoder output

    f32 = jnp.float32
    # Pre-scale i/f/o gate columns by 0.5 (single-tanh sigmoid trick; exact in FP).
    scale_cols = jnp.concatenate([jnp.full((2 * H,), 0.5, f32),
                                  jnp.ones((H,), f32),
                                  jnp.full((H,), 0.5, f32)])

    # Fold embedding + input projection + bias into one [V, 4H] table:
    #   table[v] = char_emb[v] @ W_ih + (b_ih + b_hh)
    gate_tab = (params["char_emb"] @ params["w_ih"] + params["b_gates"]) * scale_cols
    w_hh_s = params["w_hh"] * scale_cols

    dec_w_p = jnp.pad(params["dec_w"], ((0, 0), (0, Vp - V)))
    dec_b_p = jnp.pad(params["dec_b"], ((0, 0), (0, Vp - V)))

    chars_tm = chars.astype(jnp.int32).T.reshape(T * B, 1)   # time-major token ids
    lens_b1 = charlens.astype(jnp.int32).reshape(B, 1)
    h0 = params["h_init"][0]                                  # [1, H]
    c0 = params["c_init"][0]

    output, h_n, c_n, dec_p = run_char_lm(chars_tm, gate_tab, w_hh_s, lens_b1,
                                          h0, c0, dec_w_p, dec_b_p, B, T)
    decoded = dec_p[:, :, :V]
    hidden = (h_n[None, :, :], c_n[None, :, :])               # [num_layers=1, B, H]
    return output, hidden, decoded


# -----------------------------------------------------------------------------
# Pure-JAX reference (same eval-mode semantics) for a correctness sanity check.
# -----------------------------------------------------------------------------
def reference_forward(params, chars, charlens):
    embs = jnp.take(params["char_emb"], chars, axis=0)
    B, T, _ = embs.shape
    H = params["w_hh"].shape[0]
    h = jnp.broadcast_to(params["h_init"][0], (B, H))
    c = jnp.broadcast_to(params["c_init"][0], (B, H))
    outs = []
    for t in range(T):
        x_t = embs[:, t, :]
        gates = x_t @ params["w_ih"] + h @ params["w_hh"] + params["b_gates"]
        i = jax.nn.sigmoid(gates[:, 0 * H:1 * H])
        f = jax.nn.sigmoid(gates[:, 1 * H:2 * H])
        g = jnp.tanh(gates[:, 2 * H:3 * H])
        o = jax.nn.sigmoid(gates[:, 3 * H:4 * H])
        c_new = f * c + i * g
        h_new = o * jnp.tanh(c_new)
        valid = (t < charlens)[:, None]
        h = jnp.where(valid, h_new, h)
        c = jnp.where(valid, c_new, c)
        outs.append(jnp.where(valid, h_new, 0.0))
    out = jnp.stack(outs, axis=1)
    dec = out @ params["dec_w"] + params["dec_b"]
    return out, (h[None], c[None]), dec


if __name__ == "__main__":
    # args / vocab consistent with the module's __init__
    vocab_size = 64          # len(vocab['char'])
    char_emb_dim = 32
    char_hidden_dim = 32
    num_layers = 1           # char_num_layers
    B, T = 2, 8

    key = jax.random.PRNGKey(0)
    k1, k2, k3, k4, k5, k6, k7 = jax.random.split(key, 7)
    scale = 1.0 / math.sqrt(char_hidden_dim)

    params = {
        # nn.Embedding(vocab, emb_dim): N(0, 1) init
        "char_emb": jax.random.normal(k1, (vocab_size, char_emb_dim), jnp.float32),
        # nn.LSTM layer-0 weights, stored pre-transposed: [E, 4H] / [H, 4H]; bias = b_ih + b_hh
        "w_ih": jax.random.uniform(k2, (char_emb_dim, 4 * char_hidden_dim), jnp.float32, -scale, scale),
        "w_hh": jax.random.uniform(k3, (char_hidden_dim, 4 * char_hidden_dim), jnp.float32, -scale, scale),
        "b_gates": jax.random.uniform(k4, (1, 4 * char_hidden_dim), jnp.float32, -scale, scale),
        # charlstm_h_init / charlstm_c_init: nn.Parameter(torch.zeros(L, 1, H))
        "h_init": jnp.zeros((num_layers, 1, char_hidden_dim), jnp.float32),
        "c_init": jnp.zeros((num_layers, 1, char_hidden_dim), jnp.float32),
        # decoder = nn.Linear(H, vocab); stored as [H, V] + [1, V]
        "dec_w": jax.random.uniform(k5, (char_hidden_dim, vocab_size), jnp.float32, -scale, scale),
        "dec_b": jax.random.uniform(k6, (1, vocab_size), jnp.float32, -scale, scale),
    }

    chars = jax.random.randint(k7, (B, T), 0, vocab_size, dtype=jnp.int32)
    charlens = jnp.array([T, 5], dtype=jnp.int32)   # sorted descending (pack_padded_sequence)

    output, hidden, decoded = character_language_model_forward(params, chars, charlens)
    jax.block_until_ready((output, hidden, decoded))

    assert output.shape == (B, T, char_hidden_dim)
    assert hidden[0].shape == (num_layers, B, char_hidden_dim)
    assert hidden[1].shape == (num_layers, B, char_hidden_dim)
    assert decoded.shape == (B, T, vocab_size)

    # Numerical sanity check against a pure-JAX reference.
    ref_out, (ref_h, ref_c), ref_dec = reference_forward(params, chars, charlens)
    assert bool(jnp.allclose(output, ref_out, rtol=1e-4, atol=1e-4))
    assert bool(jnp.allclose(hidden[0], ref_h, rtol=1e-4, atol=1e-4))
    assert bool(jnp.allclose(hidden[1], ref_c, rtol=1e-4, atol=1e-4))
    assert bool(jnp.allclose(decoded, ref_dec, rtol=1e-4, atol=1e-4))

    print("KERNEL_OK")
</pallas_src>

<mosaic_0001>
module attributes {stable_mosaic.version = 11 : i64} {
  func.func @char_lm_kernel(%arg0: memref<16x1xi32, #tpu.memory_space<vmem>>, %arg1: memref<64x128xf32, #tpu.memory_space<vmem>>, %arg2: memref<32x128xf32, #tpu.memory_space<vmem>>, %arg3: memref<2x1xi32, #tpu.memory_space<vmem>>, %arg4: memref<1x32xf32, #tpu.memory_space<vmem>>, %arg5: memref<1x32xf32, #tpu.memory_space<vmem>>, %arg6: memref<32x128xf32, #tpu.memory_space<vmem>>, %arg7: memref<1x128xf32, #tpu.memory_space<vmem>>, %arg8: memref<2x8x32xf32, #tpu.memory_space<vmem>>, %arg9: memref<2x32xf32, #tpu.memory_space<vmem>>, %arg10: memref<2x32xf32, #tpu.memory_space<vmem>>, %arg11: memref<2x8x128xf32, #tpu.memory_space<vmem>>, %arg12: memref<16x128xf32, #tpu.memory_space<vmem>>, %arg13: memref<16x32xf32, #tpu.memory_space<vmem>>) attributes {dimension_semantics = [], scalar_prefetch = 0 : i64, scratch_operands = 2 : i64, tpu.core_type = #tpu.core_type<tc>} {
    %c0 = arith.constant 0 : index
    %c0_0 = arith.constant 0 : index
    %0 = vector.load %arg0[%c0, %c0_0] : memref<16x1xi32, #tpu.memory_space<vmem>>, vector<16x1xi32>
    %1 = tpu.iota {dimensions = array<i32: 1>} : vector<16x64xi32>
    %2 = vector.broadcast %0 : vector<16x1xi32> to vector<16x64xi32>
    %3 = arith.cmpi eq, %1, %2 : vector<16x64xi32>
    %4 = arith.extui %3 : vector<16x64xi1> to vector<16x64xi32>
    %5 = arith.sitofp %4 : vector<16x64xi32> to vector<16x64xf32>
    %c0_1 = arith.constant 0 : index
    %c0_2 = arith.constant 0 : index
    %6 = vector.load %arg1[%c0_1, %c0_2] : memref<64x128xf32, #tpu.memory_space<vmem>>, vector<64x128xf32>
    %cst = arith.constant dense<0.000000e+00> : vector<16x128xf32>
    %7 = tpu.matmul %5, %6, %cst {dimension_numbers = #tpu.dot_dimension_numbers<[1], [0], [0], [1], [0, 0, 1, 1], [], []>} : vector<16x64xf32>, vector<64x128xf32>, vector<16x128xf32> -> vector<16x128xf32>
    %c0_3 = arith.constant 0 : index
    %c0_4 = arith.constant 0 : index
    %8 = vector.load %arg12[%c0_3, %c0_4] : memref<16x128xf32, #tpu.memory_space<vmem>>, vector<16x128xf32>
    tpu.vector_store %arg12[%c0_3, %c0_4], %7 {strides = array<i32>} : memref<16x128xf32, #tpu.memory_space<vmem>>, vector<16x128xf32>,
    %c0_5 = arith.constant 0 : index
    %c0_6 = arith.constant 0 : index
    %9 = vector.load %arg2[%c0_5, %c0_6] : memref<32x128xf32, #tpu.memory_space<vmem>>, vector<32x128xf32>
    %c0_7 = arith.constant 0 : index
    %c0_8 = arith.constant 0 : index
    %10 = vector.load %arg3[%c0_7, %c0_8] : memref<2x1xi32, #tpu.memory_space<vmem>>, vector<2x1xi32>
    %c0_9 = arith.constant 0 : index
    %c0_10 = arith.constant 0 : index
    %11 = vector.load %arg4[%c0_9, %c0_10] : memref<1x32xf32, #tpu.memory_space<vmem>>, vector<1x32xf32>
    %12 = vector.shape_cast %11 : vector<1x32xf32> to vector<1x32xf32>
    %13 = vector.broadcast %12 : vector<1x32xf32> to vector<2x32xf32>
    %c0_11 = arith.constant 0 : index
    %c0_12 = arith.constant 0 : index
    %14 = vector.load %arg5[%c0_11, %c0_12] : memref<1x32xf32, #tpu.memory_space<vmem>>, vector<1x32xf32>
    %15 = vector.shape_cast %14 : vector<1x32xf32> to vector<1x32xf32>
    %16 = vector.broadcast %15 : vector<1x32xf32> to vector<2x32xf32>
    %17 = tpu.iota {dimensions = array<i32: 1>} : vector<2x128xi32>
    %c64_i32 = arith.constant 64 : i32
    %18 = vector.broadcast %c64_i32 : i32 to vector<2x128xi32>
    %19 = arith.cmpi sge, %17, %18 : vector<2x128xi32>
    %c96_i32 = arith.constant 96 : i32
    %20 = vector.broadcast %c96_i32 : i32 to vector<2x128xi32>
    %21 = arith.cmpi slt, %17, %20 : vector<2x128xi32>
    %22 = arith.andi %19, %21 : vector<2x128xi1>
    %cst_13 = arith.constant 1.000000e+00 : f32
    %cst_14 = arith.constant 5.000000e-01 : f32
    %23 = vector.broadcast %cst_13 : f32 to vector<2x128xf32>
    %24 = vector.broadcast %cst_14 : f32 to vector<2x128xf32>
    %25 = arith.select %22, %23, %24 : vector<2x128xi1>, vector<2x128xf32>
    %cst_15 = arith.constant 0.000000e+00 : f32
    %cst_16 = arith.constant 5.000000e-01 : f32
    %26 = vector.broadcast %cst_15 : f32 to vector<2x128xf32>
    %27 = vector.broadcast %cst_16 : f32 to vector<2x128xf32>
    %28 = arith.select %22, %26, %27 : vector<2x128xi1>, vector<2x128xf32>
    %c0_i32 = arith.constant 0 : i32
    %c2_i32 = arith.constant 2 : i32
    %29 = arith.muli %c0_i32, %c2_i32 : i32
    %30 = tpu.assume_multiple %29, 2 : i32
    %31 = arith.index_cast %30 : i32 to index
    %c0_17 = arith.constant 0 : index
    %32 = vector.load %arg12[%31, %c0_17] : memref<16x128xf32, #tpu.memory_space<vmem>>, vector<2x128xf32>
    %cst_18 = arith.constant dense<0.000000e+00> : vector<2x128xf32>
    %33 = tpu.matmul %13, %9, %cst_18 {dimension_numbers = #tpu.dot_dimension_numbers<[1], [0], [0], [1], [0, 0, 1, 1], [], []>} : vector<2x32xf32>, vector<32x128xf32>, vector<2x128xf32> -> vector<2x128xf32>
    %34 = arith.addf %32, %33 : vector<2x128xf32>
    %35 = math.tanh %34 : vector<2x128xf32>
    %36 = arith.mulf %35, %25 : vector<2x128xf32>
    %37 = arith.addf %36, %28 : vector<2x128xf32>
    %38 = vector.extract_strided_slice %37 {offsets = [0, 0], sizes = [2, 32], strides = [1, 1]} : vector<2x128xf32> to vector<2x32xf32>
    %39 = vector.extract_strided_slice %37 {offsets = [0, 32], sizes = [2, 32], strides = [1, 1]} : vector<2x128xf32> to vector<2x32xf32>
    %40 = vector.extract_strided_slice %37 {offsets = [0, 64], sizes = [2, 32], strides = [1, 1]} : vector<2x128xf32> to vector<2x32xf32>
    %41 = vector.extract_strided_slice %37 {offsets = [0, 96], sizes = [2, 32], strides = [1, 1]} : vector<2x128xf32> to vector<2x32xf32>
    %42 = arith.mulf %39, %16 : vector<2x32xf32>
    %43 = arith.mulf %38, %40 : vector<2x32xf32>
    %44 = arith.addf %42, %43 : vector<2x32xf32>
    %45 = math.tanh %44 : vector<2x32xf32>
    %46 = arith.mulf %41, %45 : vector<2x32xf32>
    %47 = vector.broadcast %c0_i32 : i32 to vector<2x1xi32>
    %48 = arith.cmpi slt, %47, %10 : vector<2x1xi32>
    %cst_19 = arith.constant 0.000000e+00 : f32
    %49 = vector.shape_cast %48 : vector<2x1xi1> to vector<2x1xi1>
    %50 = vector.broadcast %49 : vector<2x1xi1> to vector<2x32xi1>
    %51 = vector.broadcast %cst_19 : f32 to vector<2x32xf32>
    %52 = arith.select %50, %46, %51 : vector<2x32xi1>, vector<2x32xf32>
    %53 = arith.index_cast %30 : i32 to index
    %c0_20 = arith.constant 0 : index
    %54 = vector.load %arg13[%53, %c0_20] : memref<16x32xf32, #tpu.memory_space<vmem>>, vector<2x32xf32>
    tpu.vector_store %arg13[%53, %c0_20], %52 {strides = array<i32>} : memref<16x32xf32, #tpu.memory_space<vmem>>, vector<2x32xf32>,
    %55 = vector.shape_cast %48 : vector<2x1xi1> to vector<2x1xi1>
    %56 = vector.broadcast %55 : vector<2x1xi1> to vector<2x32xi1>
    %57 = arith.select %56, %46, %13 : vector<2x32xi1>, vector<2x32xf32>
    %58 = vector.shape_cast %48 : vector<2x1xi1> to vector<2x1xi1>
    %59 = vector.broadcast %58 : vector<2x1xi1> to vector<2x32xi1>
    %60 = arith.select %59, %44, %16 : vector<2x32xi1>, vector<2x32xf32>
    %c1_i32 = arith.constant 1 : i32
    %c2_i32_21 = arith.constant 2 : i32
    %61 = arith.muli %c1_i32, %c2_i32_21 : i32
    %62 = tpu.assume_multiple %61, 2 : i32
    %63 = arith.index_cast %62 : i32 to index
    %c0_22 = arith.constant 0 : index
    %64 = vector.load %arg12[%63, %c0_22] : memref<16x128xf32, #tpu.memory_space<vmem>>, vector<2x128xf32>
    %cst_23 = arith.constant dense<0.000000e+00> : vector<2x128xf32>
    %65 = tpu.matmul %57, %9, %cst_23 {dimension_numbers = #tpu.dot_dimension_numbers<[1], [0], [0], [1], [0, 0, 1, 1], [], []>} : vector<2x32xf32>, vector<32x128xf32>, vector<2x128xf32> -> vector<2x128xf32>
    %66 = arith.addf %64, %65 : vector<2x128xf32>
    %67 = math.tanh %66 : vector<2x128xf32>
    %68 = arith.mulf %67, %25 : vector<2x128xf32>
    %69 = arith.addf %68, %28 : vector<2x128xf32>
    %70 = vector.extract_strided_slice %69 {offsets = [0, 0], sizes = [2, 32], strides = [1, 1]} : vector<2x128xf32> to vector<2x32xf32>
    %71 = vector.extract_strided_slice %69 {offsets = [0, 32], sizes = [2, 32], strides = [1, 1]} : vector<2x128xf32> to vector<2x32xf32>
    %72 = vector.extract_strided_slice %69 {offsets = [0, 64], sizes = [2, 32], strides = [1, 1]} : vector<2x128xf32> to vector<2x32xf32>
    %73 = vector.extract_strided_slice %69 {offsets = [0, 96], sizes = [2, 32], strides = [1, 1]} : vector<2x128xf32> to vector<2x32xf32>
    %74 = arith.mulf %71, %60 : vector<2x32xf32>
    %75 = arith.mulf %70, %72 : vector<2x32xf32>
    %76 = arith.addf %74, %75 : vector<2x32xf32>
    %77 = math.tanh %76 : vector<2x32xf32>
    %78 = arith.mulf %73, %77 : vector<2x32xf32>
    %79 = vector.broadcast %c1_i32 : i32 to vector<2x1xi32>
    %80 = arith.cmpi slt, %79, %10 : vector<2x1xi32>
    %cst_24 = arith.constant 0.000000e+00 : f32
    %81 = vector.shape_cast %80 : vector<2x1xi1> to vector<2x1xi1>
    %82 = vector.broadcast %81 : vector<2x1xi1> to vector<2x32xi1>
    %83 = vector.broadcast %cst_24 : f32 to vector<2x32xf32>
    %84 = arith.select %82, %78, %83 : vector<2x32xi1>, vector<2x32xf32>
    %85 = arith.index_cast %62 : i32 to index
    %c0_25 = arith.constant 0 : index
    %86 = vector.load %arg13[%85, %c0_25] : memref<16x32xf32, #tpu.memory_space<vmem>>, vector<2x32xf32>
    tpu.vector_store %arg13[%85, %c0_25], %84 {strides = array<i32>} : memref<16x32xf32, #tpu.memory_space<vmem>>, vector<2x32xf32>,
    %87 = vector.shape_cast %80 : vector<2x1xi1> to vector<2x1xi1>
    %88 = vector.broadcast %87 : vector<2x1xi1> to vector<2x32xi1>
    %89 = arith.select %88, %78, %57 : vector<2x32xi1>, vector<2x32xf32>
    %90 = vector.shape_cast %80 : vector<2x1xi1> to vector<2x1xi1>
    %91 = vector.broadcast %90 : vector<2x1xi1> to vector<2x32xi1>
    %92 = arith.select %91, %76, %60 : vector<2x32xi1>, vector<2x32xf32>
    %c2_i32_26 = arith.constant 2 : i32
    %c2_i32_27 = arith.constant 2 : i32
    %93 = arith.muli %c2_i32_26, %c2_i32_27 : i32
    %94 = tpu.assume_multiple %93, 2 : i32
    %95 = arith.index_cast %94 : i32 to index
    %c0_28 = arith.constant 0 : index
    %96 = vector.load %arg12[%95, %c0_28] : memref<16x128xf32, #tpu.memory_space<vmem>>, vector<2x128xf32>
    %cst_29 = arith.constant dense<0.000000e+00> : vector<2x128xf32>
    %97 = tpu.matmul %89, %9, %cst_29 {dimension_numbers = #tpu.dot_dimension_numbers<[1], [0], [0], [1], [0, 0, 1, 1], [], []>} : vector<2x32xf32>, vector<32x128xf32>, vector<2x128xf32> -> vector<2x128xf32>
    %98 = arith.addf %96, %97 : vector<2x128xf32>
    %99 = math.tanh %98 : vector<2x128xf32>
    %100 = arith.mulf %99, %25 : vector<2x128xf32>
    %101 = arith.addf %100, %28 : vector<2x128xf32>
    %102 = vector.extract_strided_slice %101 {offsets = [0, 0], sizes = [2, 32], strides = [1, 1]} : vector<2x128xf32> to vector<2x32xf32>
    %103 = vector.extract_strided_slice %101 {offsets = [0, 32], sizes = [2, 32], strides = [1, 1]} : vector<2x128xf32> to vector<2x32xf32>
    %104 = vector.extract_strided_slice %101 {offsets = [0, 64], sizes = [2, 32], strides = [1, 1]} : vector<2x128xf32> to vector<2x32xf32>
    %105 = vector.extract_strided_slice %101 {offsets = [0, 96], sizes = [2, 32], strides = [1, 1]} : vector<2x128xf32> to vector<2x32xf32>
    %106 = arith.mulf %103, %92 : vector<2x32xf32>
    %107 = arith.mulf %102, %104 : vector<2x32xf32>
    %108 = arith.addf %106, %107 : vector<2x32xf32>
    %109 = math.tanh %108 : vector<2x32xf32>
    %110 = arith.mulf %105, %109 : vector<2x32xf32>
    %111 = vector.broadcast %c2_i32_26 : i32 to vector<2x1xi32>
    %112 = arith.cmpi slt, %111, %10 : vector<2x1xi32>
    %cst_30 = arith.constant 0.000000e+00 : f32
    %113 = vector.shape_cast %112 : vector<2x1xi1> to vector<2x1xi1>
    %114 = vector.broadcast %113 : vector<2x1xi1> to vector<2x32xi1>
    %115 = vector.broadcast %cst_30 : f32 to vector<2x32xf32>
    %116 = arith.select %114, %110, %115 : vector<2x32xi1>, vector<2x32xf32>
    %117 = arith.index_cast %94 : i32 to index
    %c0_31 = arith.constant 0 : index
    %118 = vector.load %arg13[%117, %c0_31] : memref<16x32xf32, #tpu.memory_space<vmem>>, vector<2x32xf32>
    tpu.vector_store %arg13[%117, %c0_31], %116 {strides = array<i32>} : memref<16x32xf32, #tpu.memory_space<vmem>>, vector<2x32xf32>,
    %119 = vector.shape_cast %112 : vector<2x1xi1> to vector<2x1xi1>
    %120 = vector.broadcast %119 : vector<2x1xi1> to vector<2x32xi1>
    %121 = arith.select %120, %110, %89 : vector<2x32xi1>, vector<2x32xf32>
    %122 = vector.shape_cast %112 : vector<2x1xi1> to vector<2x1xi1>
    %123 = vector.broadcast %122 : vector<2x1xi1> to vector<2x32xi1>
    %124 = arith.select %123, %108, %92 : vector<2x32xi1>, vector<2x32xf32>
    %c3_i32 = arith.constant 3 : i32
    %c2_i32_32 = arith.constant 2 : i32
    %125 = arith.muli %c3_i32, %c2_i32_32 : i32
    %126 = tpu.assume_multiple %125, 2 : i32
    %127 = arith.index_cast %126 : i32 to index
    %c0_33 = arith.constant 0 : index
    %128 = vector.load %arg12[%127, %c0_33] : memref<16x128xf32, #tpu.memory_space<vmem>>, vector<2x128xf32>
    %cst_34 = arith.constant dense<0.000000e+00> : vector<2x128xf32>
    %129 = tpu.matmul %121, %9, %cst_34 {dimension_numbers = #tpu.dot_dimension_numbers<[1], [0], [0], [1], [0, 0, 1, 1], [], []>} : vector<2x32xf32>, vector<32x128xf32>, vector<2x128xf32> -> vector<2x128xf32>
    %130 = arith.addf %128, %129 : vector<2x128xf32>
    %131 = math.tanh %130 : vector<2x128xf32>
    %132 = arith.mulf %131, %25 : vector<2x128xf32>
    %133 = arith.addf %132, %28 : vector<2x128xf32>
    %134 = vector.extract_strided_slice %133 {offsets = [0, 0], sizes = [2, 32], strides = [1, 1]} : vector<2x128xf32> to vector<2x32xf32>
    %135 = vector.extract_strided_slice %133 {offsets = [0, 32], sizes = [2, 32], strides = [1, 1]} : vector<2x128xf32> to vector<2x32xf32>
    %136 = vector.extract_strided_slice %133 {offsets = [0, 64], sizes = [2, 32], strides = [1, 1]} : vector<2x128xf32> to vector<2x32xf32>
    %137 = vector.extract_strided_slice %133 {offsets = [0, 96], sizes = [2, 32], strides = [1, 1]} : vector<2x128xf32> to vector<2x32xf32>
    %138 = arith.mulf %135, %124 : vector<2x32xf32>
    %139 = arith.mulf %134, %136 : vector<2x32xf32>
    %140 = arith.addf %138, %139 : vector<2x32xf32>
    %141 = math.tanh %140 : vector<2x32xf32>
    %142 = arith.mulf %137, %141 : vector<2x32xf32>
    %143 = vector.broadcast %c3_i32 : i32 to vector<2x1xi32>
    %144 = arith.cmpi slt, %143, %10 : vector<2x1xi32>
    %cst_35 = arith.constant 0.000000e+00 : f32
    %145 = vector.shape_cast %144 : vector<2x1xi1> to vector<2x1xi1>
    %146 = vector.broadcast %145 : vector<2x1xi1> to vector<2x32xi1>
    %147 = vector.broadcast %cst_35 : f32 to vector<2x32xf32>
    %148 = arith.select %146, %142, %147 : vector<2x32xi1>, vector<2x32xf32>
    %149 = arith.index_cast %126 : i32 to index
    %c0_36 = arith.constant 0 : index
    %150 = vector.load %arg13[%149, %c0_36] : memref<16x32xf32, #tpu.memory_space<vmem>>, vector<2x32xf32>
    tpu.vector_store %arg13[%149, %c0_36], %148 {strides = array<i32>} : memref<16x32xf32, #tpu.memory_space<vmem>>, vector<2x32xf32>,
    %151 = vector.shape_cast %144 : vector<2x1xi1> to vector<2x1xi1>
    %152 = vector.broadcast %151 : vector<2x1xi1> to vector<2x32xi1>
    %153 = arith.select %152, %142, %121 : vector<2x32xi1>, vector<2x32xf32>
    %154 = vector.shape_cast %144 : vector<2x1xi1> to vector<2x1xi1>
    %155 = vector.broadcast %154 : vector<2x1xi1> to vector<2x32xi1>
    %156 = arith.select %155, %140, %124 : vector<2x32xi1>, vector<2x32xf32>
    %c4_i32 = arith.constant 4 : i32
    %c2_i32_37 = arith.constant 2 : i32
    %157 = arith.muli %c4_i32, %c2_i32_37 : i32
    %158 = tpu.assume_multiple %157, 2 : i32
    %159 = arith.index_cast %158 : i32 to index
    %c0_38 = arith.constant 0 : index
    %160 = vector.load %arg12[%159, %c0_38] : memref<16x128xf32, #tpu.memory_space<vmem>>, vector<2x128xf32>
    %cst_39 = arith.constant dense<0.000000e+00> : vector<2x128xf32>
    %161 = tpu.matmul %153, %9, %cst_39 {dimension_numbers = #tpu.dot_dimension_numbers<[1], [0], [0], [1], [0, 0, 1, 1], [], []>} : vector<2x32xf32>, vector<32x128xf32>, vector<2x128xf32> -> vector<2x128xf32>
    %162 = arith.addf %160, %161 : vector<2x128xf32>
    %163 = math.tanh %162 : vector<2x128xf32>
    %164 = arith.mulf %163, %25 : vector<2x128xf32>
    %165 = arith.addf %164, %28 : vector<2x128xf32>
    %166 = vector.extract_strided_slice %165 {offsets = [0, 0], sizes = [2, 32], strides = [1, 1]} : vector<2x128xf32> to vector<2x32xf32>
    %167 = vector.extract_strided_slice %165 {offsets = [0, 32], sizes = [2, 32], strides = [1, 1]} : vector<2x128xf32> to vector<2x32xf32>
    %168 = vector.extract_strided_slice %165 {offsets = [0, 64], sizes = [2, 32], strides = [1, 1]} : vector<2x128xf32> to vector<2x32xf32>
    %169 = vector.extract_strided_slice %165 {offsets = [0, 96], sizes = [2, 32], strides = [1, 1]} : vector<2x128xf32> to vector<2x32xf32>
    %170 = arith.mulf %167, %156 : vector<2x32xf32>
    %171 = arith.mulf %166, %168 : vector<2x32xf32>
    %172 = arith.addf %170, %171 : vector<2x32xf32>
    %173 = math.tanh %172 : vector<2x32xf32>
    %174 = arith.mulf %169, %173 : vector<2x32xf32>
    %175 = vector.broadcast %c4_i32 : i32 to vector<2x1xi32>
    %176 = arith.cmpi slt, %175, %10 : vector<2x1xi32>
    %cst_40 = arith.constant 0.000000e+00 : f32
    %177 = vector.shape_cast %176 : vector<2x1xi1> to vector<2x1xi1>
    %178 = vector.broadcast %177 : vector<2x1xi1> to vector<2x32xi1>
    %179 = vector.broadcast %cst_40 : f32 to vector<2x32xf32>
    %180 = arith.select %178, %174, %179 : vector<2x32xi1>, vector<2x32xf32>
    %181 = arith.index_cast %158 : i32 to index
    %c0_41 = arith.constant 0 : index
    %182 = vector.load %arg13[%181, %c0_41] : memref<16x32xf32, #tpu.memory_space<vmem>>, vector<2x32xf32>
    tpu.vector_store %arg13[%181, %c0_41], %180 {strides = array<i32>} : memref<16x32xf32, #tpu.memory_space<vmem>>, vector<2x32xf32>,
    %183 = vector.shape_cast %176 : vector<2x1xi1> to vector<2x1xi1>
    %184 = vector.broadcast %183 : vector<2x1xi1> to vector<2x32xi1>
    %185 = arith.select %184, %174, %153 : vector<2x32xi1>, vector<2x32xf32>
    %186 = vector.shape_cast %176 : vector<2x1xi1> to vector<2x1xi1>
    %187 = vector.broadcast %186 : vector<2x1xi1> to vector<2x32xi1>
    %188 = arith.select %187, %172, %156 : vector<2x32xi1>, vector<2x32xf32>
    %c5_i32 = arith.constant 5 : i32
    %c2_i32_42 = arith.constant 2 : i32
    %189 = arith.muli %c5_i32, %c2_i32_42 : i32
    %190 = tpu.assume_multiple %189, 2 : i32
    %191 = arith.index_cast %190 : i32 to index
    %c0_43 = arith.constant 0 : index
    %192 = vector.load %arg12[%191, %c0_43] : memref<16x128xf32, #tpu.memory_space<vmem>>, vector<2x128xf32>
    %cst_44 = arith.constant dense<0.000000e+00> : vector<2x128xf32>
    %193 = tpu.matmul %185, %9, %cst_44 {dimension_numbers = #tpu.dot_dimension_numbers<[1], [0], [0], [1], [0, 0, 1, 1], [], []>} : vector<2x32xf32>, vector<32x128xf32>, vector<2x128xf32> -> vector<2x128xf32>
    %194 = arith.addf %192, %193 : vector<2x128xf32>
    %195 = math.tanh %194 : vector<2x128xf32>
    %196 = arith.mulf %195, %25 : vector<2x128xf32>
    %197 = arith.addf %196, %28 : vector<2x128xf32>
    %198 = vector.extract_strided_slice %197 {offsets = [0, 0], sizes = [2, 32], strides = [1, 1]} : vector<2x128xf32> to vector<2x32xf32>
    %199 = vector.extract_strided_slice %197 {offsets = [0, 32], sizes = [2, 32], strides = [1, 1]} : vector<2x128xf32> to vector<2x32xf32>
    %200 = vector.extract_strided_slice %197 {offsets = [0, 64], sizes = [2, 32], strides = [1, 1]} : vector<2x128xf32> to vector<2x32xf32>
    %201 = vector.extract_strided_slice %197 {offsets = [0, 96], sizes = [2, 32], strides = [1, 1]} : vector<2x128xf32> to vector<2x32xf32>
    %202 = arith.mulf %199, %188 : vector<2x32xf32>
    %203 = arith.mulf %198, %200 : vector<2x32xf32>
    %204 = arith.addf %202, %203 : vector<2x32xf32>
    %205 = math.tanh %204 : vector<2x32xf32>
    %206 = arith.mulf %201, %205 : vector<2x32xf32>
    %207 = vector.broadcast %c5_i32 : i32 to vector<2x1xi32>
    %208 = arith.cmpi slt, %207, %10 : vector<2x1xi32>
    %cst_45 = arith.constant 0.000000e+00 : f32
    %209 = vector.shape_cast %208 : vector<2x1xi1> to vector<2x1xi1>
    %210 = vector.broadcast %209 : vector<2x1xi1> to vector<2x32xi1>
    %211 = vector.broadcast %cst_45 : f32 to vector<2x32xf32>
    %212 = arith.select %210, %206, %211 : vector<2x32xi1>, vector<2x32xf32>
    %213 = arith.index_cast %190 : i32 to index
    %c0_46 = arith.constant 0 : index
    %214 = vector.load %arg13[%213, %c0_46] : memref<16x32xf32, #tpu.memory_space<vmem>>, vector<2x32xf32>
    tpu.vector_store %arg13[%213, %c0_46], %212 {strides = array<i32>} : memref<16x32xf32, #tpu.memory_space<vmem>>, vector<2x32xf32>,
    %215 = vector.shape_cast %208 : vector<2x1xi1> to vector<2x1xi1>
    %216 = vector.broadcast %215 : vector<2x1xi1> to vector<2x32xi1>
    %217 = arith.select %216, %206, %185 : vector<2x32xi1>, vector<2x32xf32>
    %218 = vector.shape_cast %208 : vector<2x1xi1> to vector<2x1xi1>
    %219 = vector.broadcast %218 : vector<2x1xi1> to vector<2x32xi1>
    %220 = arith.select %219, %204, %188 : vector<2x32xi1>, vector<2x32xf32>
    %c6_i32 = arith.constant 6 : i32
    %c2_i32_47 = arith.constant 2 : i32
    %221 = arith.muli %c6_i32, %c2_i32_47 : i32
    %222 = tpu.assume_multiple %221, 2 : i32
    %223 = arith.index_cast %222 : i32 to index
    %c0_48 = arith.constant 0 : index
    %224 = vector.load %arg12[%223, %c0_48] : memref<16x128xf32, #tpu.memory_space<vmem>>, vector<2x128xf32>
    %cst_49 = arith.constant dense<0.000000e+00> : vector<2x128xf32>
    %225 = tpu.matmul %217, %9, %cst_49 {dimension_numbers = #tpu.dot_dimension_numbers<[1], [0], [0], [1], [0, 0, 1, 1], [], []>} : vector<2x32xf32>, vector<32x128xf32>, vector<2x128xf32> -> vector<2x128xf32>
    %226 = arith.addf %224, %225 : vector<2x128xf32>
    %227 = math.tanh %226 : vector<2x128xf32>
    %228 = arith.mulf %227, %25 : vector<2x128xf32>
    %229 = arith.addf %228, %28 : vector<2x128xf32>
    %230 = vector.extract_strided_slice %229 {offsets = [0, 0], sizes = [2, 32], strides = [1, 1]} : vector<2x128xf32> to vector<2x32xf32>
    %231 = vector.extract_strided_slice %229 {offsets = [0, 32], sizes = [2, 32], strides = [1, 1]} : vector<2x128xf32> to vector<2x32xf32>
    %232 = vector.extract_strided_slice %229 {offsets = [0, 64], sizes = [2, 32], strides = [1, 1]} : vector<2x128xf32> to vector<2x32xf32>
    %233 = vector.extract_strided_slice %229 {offsets = [0, 96], sizes = [2, 32], strides = [1, 1]} : vector<2x128xf32> to vector<2x32xf32>
    %234 = arith.mulf %231, %220 : vector<2x32xf32>
    %235 = arith.mulf %230, %232 : vector<2x32xf32>
    %236 = arith.addf %234, %235 : vector<2x32xf32>
    %237 = math.tanh %236 : vector<2x32xf32>
    %238 = arith.mulf %233, %237 : vector<2x32xf32>
    %239 = vector.broadcast %c6_i32 : i32 to vector<2x1xi32>
    %240 = arith.cmpi slt, %239, %10 : vector<2x1xi32>
    %cst_50 = arith.constant 0.000000e+00 : f32
    %241 = vector.shape_cast %240 : vector<2x1xi1> to vector<2x1xi1>
    %242 = vector.broadcast %241 : vector<2x1xi1> to vector<2x32xi1>
    %243 = vector.broadcast %cst_50 : f32 to vector<2x32xf32>
    %244 = arith.select %242, %238, %243 : vector<2x32xi1>, vector<2x32xf32>
    %245 = arith.index_cast %222 : i32 to index
    %c0_51 = arith.constant 0 : index
    %246 = vector.load %arg13[%245, %c0_51] : memref<16x32xf32, #tpu.memory_space<vmem>>, vector<2x32xf32>
    tpu.vector_store %arg13[%245, %c0_51], %244 {strides = array<i32>} : memref<16x32xf32, #tpu.memory_space<vmem>>, vector<2x32xf32>,
    %247 = vector.shape_cast %240 : vector<2x1xi1> to vector<2x1xi1>
    %248 = vector.broadcast %247 : vector<2x1xi1> to vector<2x32xi1>
    %249 = arith.select %248, %238, %217 : vector<2x32xi1>, vector<2x32xf32>
    %250 = vector.shape_cast %240 : vector<2x1xi1> to vector<2x1xi1>
    %251 = vector.broadcast %250 : vector<2x1xi1> to vector<2x32xi1>
    %252 = arith.select %251, %236, %220 : vector<2x32xi1>, vector<2x32xf32>
    %c7_i32 = arith.constant 7 : i32
    %c2_i32_52 = arith.constant 2 : i32
    %253 = arith.muli %c7_i32, %c2_i32_52 : i32
    %254 = tpu.assume_multiple %253, 2 : i32
    %255 = arith.index_cast %254 : i32 to index
    %c0_53 = arith.constant 0 : index
    %256 = vector.load %arg12[%255, %c0_53] : memref<16x128xf32, #tpu.memory_space<vmem>>, vector<2x128xf32>
    %cst_54 = arith.constant dense<0.000000e+00> : vector<2x128xf32>
    %257 = tpu.matmul %249, %9, %cst_54 {dimension_numbers = #tpu.dot_dimension_numbers<[1], [0], [0], [1], [0, 0, 1, 1], [], []>} : vector<2x32xf32>, vector<32x128xf32>, vector<2x128xf32> -> vector<2x128xf32>
    %258 = arith.addf %256, %257 : vector<2x128xf32>
    %259 = math.tanh %258 : vector<2x128xf32>
    %260 = arith.mulf %259, %25 : vector<2x128xf32>
    %261 = arith.addf %260, %28 : vector<2x128xf32>
    %262 = vector.extract_strided_slice %261 {offsets = [0, 0], sizes = [2, 32], strides = [1, 1]} : vector<2x128xf32> to vector<2x32xf32>
    %263 = vector.extract_strided_slice %261 {offsets = [0, 32], sizes = [2, 32], strides = [1, 1]} : vector<2x128xf32> to vector<2x32xf32>
    %264 = vector.extract_strided_slice %261 {offsets = [0, 64], sizes = [2, 32], strides = [1, 1]} : vector<2x128xf32> to vector<2x32xf32>
    %265 = vector.extract_strided_slice %261 {offsets = [0, 96], sizes = [2, 32], strides = [1, 1]} : vector<2x128xf32> to vector<2x32xf32>
    %266 = arith.mulf %263, %252 : vector<2x32xf32>
    %267 = arith.mulf %262, %264 : vector<2x32xf32>
    %268 = arith.addf %266, %267 : vector<2x32xf32>
    %269 = math.tanh %268 : vector<2x32xf32>
    %270 = arith.mulf %265, %269 : vector<2x32xf32>
    %271 = vector.broadcast %c7_i32 : i32 to vector<2x1xi32>
    %272 = arith.cmpi slt, %271, %10 : vector<2x1xi32>
    %cst_55 = arith.constant 0.000000e+00 : f32
    %273 = vector.shape_cast %272 : vector<2x1xi1> to vector<2x1xi1>
    %274 = vector.broadcast %273 : vector<2x1xi1> to vector<2x32xi1>
    %275 = vector.broadcast %cst_55 : f32 to vector<2x32xf32>
    %276 = arith.select %274, %270, %275 : vector<2x32xi1>, vector<2x32xf32>
    %277 = arith.index_cast %254 : i32 to index
    %c0_56 = arith.constant 0 : index
    %278 = vector.load %arg13[%277, %c0_56] : memref<16x32xf32, #tpu.memory_space<vmem>>, vector<2x32xf32>
    tpu.vector_store %arg13[%277, %c0_56], %276 {strides = array<i32>} : memref<16x32xf32, #tpu.memory_space<vmem>>, vector<2x32xf32>,
    %279 = vector.shape_cast %272 : vector<2x1xi1> to vector<2x1xi1>
    %280 = vector.broadcast %279 : vector<2x1xi1> to vector<2x32xi1>
    %281 = arith.select %280, %270, %249 : vector<2x32xi1>, vector<2x32xf32>
    %282 = vector.shape_cast %272 : vector<2x1xi1> to vector<2x1xi1>
    %283 = vector.broadcast %282 : vector<2x1xi1> to vector<2x32xi1>
    %284 = arith.select %283, %268, %252 : vector<2x32xi1>, vector<2x32xf32>
    %c8_i32 = arith.constant 8 : i32
    %c0_57 = arith.constant 0 : index
    %c0_58 = arith.constant 0 : index
    %285 = vector.load %arg9[%c0_57, %c0_58] : memref<2x32xf32, #tpu.memory_space<vmem>>, vector<2x32xf32>
    tpu.vector_store %arg9[%c0_57, %c0_58], %281 {strides = array<i32>} : memref<2x32xf32, #tpu.memory_space<vmem>>, vector<2x32xf32>,
    %c0_59 = arith.constant 0 : index
    %c0_60 = arith.constant 0 : index
    %286 = vector.load %arg10[%c0_59, %c0_60] : memref<2x32xf32, #tpu.memory_space<vmem>>, vector<2x32xf32>
    tpu.vector_store %arg10[%c0_59, %c0_60], %284 {strides = array<i32>} : memref<2x32xf32, #tpu.memory_space<vmem>>, vector<2x32xf32>,
    %c0_61 = arith.constant 0 : index
    %c0_62 = arith.constant 0 : index
    %287 = tpu.strided_load %arg13[%c0_61, %c0_62] {strides = array<i32: 2, 1>} : memref<16x32xf32, #tpu.memory_space<vmem>>, vector<8x32xf32>
    %c1 = arith.constant 1 : index
    %c0_63 = arith.constant 0 : index
    %288 = tpu.strided_load %arg13[%c1, %c0_63] {strides = array<i32: 2, 1>} : memref<16x32xf32, #tpu.memory_space<vmem>>, vector<8x32xf32>
    %289 = tpu.concatenate %287, %288 in 0 : vector<8x32xf32>, vector<8x32xf32> -> vector<16x32xf32>
    %290 = vector.shape_cast %289 : vector<16x32xf32> to vector<2x8x32xf32>
    %c0_64 = arith.constant 0 : index
    %c0_65 = arith.constant 0 : index
    %c0_66 = arith.constant 0 : index
    %291 = vector.load %arg8[%c0_64, %c0_65, %c0_66] : memref<2x8x32xf32, #tpu.memory_space<vmem>>, vector<2x8x32xf32>
    tpu.vector_store %arg8[%c0_64, %c0_65, %c0_66], %290 {strides = array<i32>} : memref<2x8x32xf32, #tpu.memory_space<vmem>>, vector<2x8x32xf32>,
    %c0_67 = arith.constant 0 : index
    %c0_68 = arith.constant 0 : index
    %292 = vector.load %arg6[%c0_67, %c0_68] : memref<32x128xf32, #tpu.memory_space<vmem>>, vector<32x128xf32>
    %cst_69 = arith.constant dense<0.000000e+00> : vector<16x128xf32>
    %293 = tpu.matmul %289, %292, %cst_69 {dimension_numbers = #tpu.dot_dimension_numbers<[1], [0], [0], [1], [0, 0, 1, 1], [], []>} : vector<16x32xf32>, vector<32x128xf32>, vector<16x128xf32> -> vector<16x128xf32>
    %c0_70 = arith.constant 0 : index
    %c0_71 = arith.constant 0 : index
    %294 = vector.load %arg7[%c0_70, %c0_71] : memref<1x128xf32, #tpu.memory_space<vmem>>, vector<1x128xf32>
    %295 = vector.broadcast %294 : vector<1x128xf32> to vector<16x128xf32>
    %296 = arith.addf %293, %295 : vector<16x128xf32>
    %297 = vector.shape_cast %296 : vector<16x128xf32> to vector<2x8x128xf32>
    %c0_72 = arith.constant 0 : index
    %c0_73 = arith.constant 0 : index
    %c0_74 = arith.constant 0 : index
    %298 = vector.load %arg11[%c0_72, %c0_73, %c0_74] : memref<2x8x128xf32, #tpu.memory_space<vmem>>, vector<2x8x128xf32>
    tpu.vector_store %arg11[%c0_72, %c0_73, %c0_74], %297 {strides = array<i32>} : memref<2x8x128xf32, #tpu.memory_space<vmem>>, vector<2x8x128xf32>,
    return
  }
}

</mosaic_0001>

<llo_original>
// kernel: tpu_custom_call.1
$region0: #{tpu_custom_call.1}
  #allocation0 [shape = 'u32[]', space=smem, size = 0x4, offset = 0x4, fixed_abs, tag = 'smem constant byte address 0x4 - core index']
  #allocation1 [shape = 'u32[72,128]{1,0:T(1,128)}', space=vmem, size = 0x9000, scoped, tag = 'internal scratch']
  #allocation2 [shape = 'f32[16,128]{1,0:T(8,128)}', space=vmem, size = 0x2000, scoped, tag = 'scratch operand']
  #allocation3 [shape = 'f32[16,32]{1,0:T(8,128)}', space=vmem, size = 0x2000, scoped, tag = 'scratch operand']
  %s0 = inlined_call_operand.vmem [shape: s32[16,1], index: 0, kind: input, shape index: {}]
  %s1 = inlined_call_operand.hbm [shape: f32[64,128], index: 1, kind: input, shape index: {}]
  %s2 = inlined_call_operand.hbm [shape: f32[32,128], index: 2, kind: input, shape index: {}]
  %s3 = inlined_call_operand.vmem [shape: s32[2,1], index: 3, kind: input, shape index: {}]
  %s4 = inlined_call_operand.vmem [shape: f32[1,32], index: 4, kind: input, shape index: {}]
  %s5 = inlined_call_operand.vmem [shape: f32[1,32], index: 5, kind: input, shape index: {}]
  %s6 = inlined_call_operand.hbm [shape: f32[32,128], index: 6, kind: input, shape index: {}]
  %s7 = inlined_call_operand.vmem [shape: f32[1,128], index: 7, kind: input, shape index: {}]
  %s8 = inlined_call_operand.hbm [shape: f32[2,8,32], index: 8, kind: output, shape index: {0}]
  %s9 = inlined_call_operand.hbm [shape: f32[2,32], index: 9, kind: output, shape index: {1}]
  %s10 = inlined_call_operand.hbm [shape: f32[2,32], index: 10, kind: output, shape index: {2}]
  %s11 = inlined_call_operand.hbm [shape: f32[2,8,128], index: 11, kind: output, shape index: {3}]
  %12 = xla_tuple %s8, %s9, %s10, %s11
  %s13 = sld [smem:[#allocation0]]
  $region78: #{tpu_custom_call.1} parent=0
    _
  %s15 = ssub.s32 1, %s13
  %s16 = scalar_select 0, %s15, %s13
  $region1: #{tpu_custom_call.1} parent=0
    #allocation4 [shape = 'u8[32768]{0}', space=vmem, size = 0x8000, scoped, tag = 'input window, operand 1, single buffered']
    #allocation5 [shape = 's32[1]{0}', space=sflag, size = 0x4, scoped, tag = 'scoped memory for tpu_custom_call.1']
    #allocation6 [shape = 's32[1]{0}', space=sflag, size = 0x4, scoped, tag = 'scoped memory for tpu_custom_call.1']
    #allocation7 [shape = 'u8[16384]{0}', space=vmem, size = 0x4000, scoped, tag = 'input window, operand 2, single buffered']
    #allocation8 [shape = 's32[1]{0}', space=sflag, size = 0x4, scoped, tag = 'scoped memory for tpu_custom_call.1']
    #allocation9 [shape = 'u8[16384]{0}', space=vmem, size = 0x4000, scoped, tag = 'input window, operand 6, single buffered']
    #allocation10 [shape = 'u8[8192]{0}', space=vmem, size = 0x2000, scoped, tag = 'output window, operand 0, single buffered']
    #allocation11 [shape = 'u8[1024]{0}', space=vmem, size = 0x400, scoped, tag = 'output window, operand 1, single buffered']
    #allocation12 [shape = 's32[1]{0}', space=sflag, size = 0x4, scoped, tag = 'scoped memory for tpu_custom_call.1']
    #allocation13 [shape = 'u8[1024]{0}', space=vmem, size = 0x400, scoped, tag = 'output window, operand 2, single buffered']
    #allocation14 [shape = 'u8[8192]{0}', space=vmem, size = 0x2000, scoped, tag = 'output window, operand 3, single buffered']
    #allocation15 [shape = 's32[1]{0}', space=sflag, size = 0x4, scoped, tag = 'scoped memory for tpu_custom_call.1']
    %17 = vsyncpa [#allocation5], 0
    %18 = vsyncpa [#allocation8], 0
    %19 = vsyncpa [#allocation6], 0
    %20 = vsyncpa [#allocation12], 0
    %21 = vsyncpa [#allocation15], 0
    // Predicated region
    $region2: #{tpu_custom_call.1} parent=1 // pred_check
      _
    $region3: #{tpu_custom_call.1} parent=1 // pred_check_branch
      %23 = sbr.rel (0) target = $region5
    $region4: #{tpu_custom_call.1} parent=1 // pred_region
      _
    $region5: #{tpu_custom_call.1} parent=1 // pred_fallthru
      _
    // Predicated region
    $region6: #{tpu_custom_call.1} parent=1 // pred_check
      _
    $region7: #{tpu_custom_call.1} parent=1 // pred_check_branch
      %25 = sbr.rel (0) target = $region9
    $region8: #{tpu_custom_call.1} parent=1 // pred_region
      %27 = vsyncadd [#allocation5], 0
      %s28 = sshll.u32 %s1, 4
      %s29 = int_to_ptr.hbm [resolvable:$true] %s28
      %s30 = sshll.u32 [#allocation4], 4
      %s31 = int_to_ptr.vmem [resolvable:$true] %s30
      %36 = dma.hbm_to_vmem [thread:$0]  %s29, 1024, %s31, [#allocation5], 128, 128, 8
    $region9: #{tpu_custom_call.1} parent=1 // pred_fallthru
      _
    // Predicated region
    $region10: #{tpu_custom_call.1} parent=1 // pred_check
      _
    $region11: #{tpu_custom_call.1} parent=1 // pred_check_branch
      %38 = sbr.rel (0) target = $region13
    $region12: #{tpu_custom_call.1} parent=1 // pred_region
      %40 = vsyncadd [#allocation8], 0
      %s41 = sshll.u32 %s2, 4
      %s42 = int_to_ptr.hbm [resolvable:$true] %s41
      %s43 = sshll.u32 [#allocation7], 4
      %s44 = int_to_ptr.vmem [resolvable:$true] %s43
      %49 = dma.hbm_to_vmem [thread:$0]  %s42, 512, %s44, [#allocation8], 128, 128, 8
    $region13: #{tpu_custom_call.1} parent=1 // pred_fallthru
      _
    // Predicated region
    $region14: #{tpu_custom_call.1} parent=1 // pred_check
      _
    $region15: #{tpu_custom_call.1} parent=1 // pred_check_branch
      %51 = sbr.rel (0) target = $region17
    $region16: #{tpu_custom_call.1} parent=1 // pred_region
      _
    $region17: #{tpu_custom_call.1} parent=1 // pred_fallthru
      _
    // Predicated region
    $region18: #{tpu_custom_call.1} parent=1 // pred_check
      _
    $region19: #{tpu_custom_call.1} parent=1 // pred_check_branch
      %53 = sbr.rel (0) target = $region21
    $region20: #{tpu_custom_call.1} parent=1 // pred_region
      _
    $region21: #{tpu_custom_call.1} parent=1 // pred_fallthru
      _
    // Predicated region
    $region22: #{tpu_custom_call.1} parent=1 // pred_check
      _
    $region23: #{tpu_custom_call.1} parent=1 // pred_check_branch
      %55 = sbr.rel (0) target = $region25
    $region24: #{tpu_custom_call.1} parent=1 // pred_region
      _
    $region25: #{tpu_custom_call.1} parent=1 // pred_fallthru
      _
    // Predicated region
    $region26: #{tpu_custom_call.1} parent=1 // pred_check
      _
    $region27: #{tpu_custom_call.1} parent=1 // pred_check_branch
      %57 = sbr.rel (0) target = $region29
    $region28: #{tpu_custom_call.1} parent=1 // pred_region
      %59 = vsyncadd [#allocation8], 0
      %s60 = sshll.u32 %s6, 4
      %s61 = int_to_ptr.hbm [resolvable:$true] %s60
      %s62 = sshll.u32 [#allocation9], 4
      %s63 = int_to_ptr.vmem [resolvable:$true] %s62
      %68 = dma.hbm_to_vmem [thread:$0]  %s61, 512, %s63, [#allocation8], 128, 128, 8
    $region29: #{tpu_custom_call.1} parent=1 // pred_fallthru
      _
    // Predicated region
    $region30: #{tpu_custom_call.1} parent=1 // pred_check
      _
    $region31: #{tpu_custom_call.1} parent=1 // pred_check_branch
      %70 = sbr.rel (0) target = $region33
    $region32: #{tpu_custom_call.1} parent=1 // pred_region
      _
    $region33: #{tpu_custom_call.1} parent=1 // pred_fallthru
      _
    // Predicated region
    $region34: #{tpu_custom_call.1} parent=1 // pred_check
      _
    $region35: #{tpu_custom_call.1} parent=1 // pred_check_branch
      %72 = sbr.rel (0) target = $region37
    $region36: #{tpu_custom_call.1} parent=1 // pred_region
      %74 = dma.done [#allocation5], 1024
    $region37: #{tpu_custom_call.1} parent=1 // pred_fallthru
      _
    // Predicated region
    $region38: #{tpu_custom_call.1} parent=1 // pred_check
      _
    $region39: #{tpu_custom_call.1} parent=1 // pred_check_branch
      %76 = sbr.rel (0) target = $region41
    $region40: #{tpu_custom_call.1} parent=1 // pred_region
      %78 = dma.done [#allocation8], 512
    $region41: #{tpu_custom_call.1} parent=1 // pred_fallthru
      _
    // Predicated region
    $region42: #{tpu_custom_call.1} parent=1 // pred_check
      _
    $region43: #{tpu_custom_call.1} parent=1 // pred_check_branch
      %80 = sbr.rel (0) target = $region45
    $region44: #{tpu_custom_call.1} parent=1 // pred_region
      %82 = dma.done [#allocation8], 512
    $region45: #{tpu_custom_call.1} parent=1 // pred_fallthru
      _
    %v83 = vld [vmem:[%s0] sm:$0xff]
    %v84 = vld [vmem:[%s0 + $0x8] sm:$0xff]
    %v85 = vlaneseq
    %v86 = vand.u32 %v85, 127
    %87 = vset.pattern.permute.xlu0 0
    %88 = vperm.xlu0 %87, %v83
    %v89 = vpop.permute.xlu0 %88
    %90 = vset.pattern.permute.xlu0 0
    %91 = vperm.xlu0 %90, %v84
    %v92 = vpop.permute.xlu0 %91
    %vm93 = vcmp.eq.s32.totalorder %v86, %v89
    %vm94 = vcmp.eq.s32.totalorder %v86, %v92
    %v95 = vsel %vm93, 1, 0
    %v96 = vsel %vm94, 1, 0
    %v97 = vcvt.s32.f32 %v95
    %v98 = vcvt.s32.f32 %v96
    %v99 = vld [vmem:[#allocation4] sm:$0xff]
    %v100 = vld [vmem:[#allocation4 + $0x8] sm:$0xff]
    %v101 = vld [vmem:[#allocation4 + $0x10] sm:$0xff]
    %v102 = vld [vmem:[#allocation4 + $0x18] sm:$0xff]
    %v103 = vld [vmem:[#allocation4 + $0x20] sm:$0xff]
    %v104 = vld [vmem:[#allocation4 + $0x28] sm:$0xff]
    %v105 = vld [vmem:[#allocation4 + $0x30] sm:$0xff]
    %v106 = vld [vmem:[#allocation4 + $0x38] sm:$0xff]
    %vm107 = vcmask 523264
    %v109 = vsel %vm107, %v97, 0
    %v112 = vsel %vm107, %v98, 0
    %114 = vmatpush.msra.mxu0 0.0
    %115 = vmatpush.msra.mxu0 0.0
    %116 = vmatpush.msra.mxu0 0.0
    %117 = vmatpush.msra.mxu0 0.0
    %118 = vmatpush.msra.mxu0 0.0
    %119 = vmatpush.msra.mxu0 0.0
    %120 = vmatpush.msra.mxu0 0.0
    %121 = vmatpush.msra.mxu0 0.0
    %122 = vmatpush.msra.mxu0 %v106
    %123 = vmatpush.msra.mxu0 %v105
    %124 = vmatpush.msra.mxu0 %v104
    %125 = vmatpush.msra.mxu0 %v103
    %126 = vmatpush.msra.mxu0 %v102
    %127 = vmatpush.msra.mxu0 %v101
    %128 = vmatpush.msra.mxu0 %v100
    %129 = vmatpush.msra.mxu0 %v99
    %130 = vmatmul.f32.gmra.mxu0 %v109
    %v131 = vpop.f32.mrf.mxu0
    %v132 = vadd.f32 0.0, %v131
    %133 = vmatmul.f32.gmra.mxu0 %v112
    %v134 = vpop.f32.mrf.mxu0
    %v135 = vadd.f32 0.0, %v134
    %136 = vdwg.mxu0
    %137 = vst [vmem:[#allocation2] sm:$0xff] %v132
    %138 = vst [vmem:[#allocation2 + $0x8] sm:$0xff] %v135
    %v139 = vld [vmem:[#allocation7] sm:$0xff]
    %v140 = vld [vmem:[#allocation7 + $0x8] sm:$0xff]
    %v141 = vld [vmem:[#allocation7 + $0x10] sm:$0xff]
    %v142 = vld [vmem:[#allocation7 + $0x18] sm:$0xff]
    %v143 = vld [vmem:[%s3] sm:$0x3]
    %v144 = vld [vmem:[%s4] sm:$0x1]
    %v146 = vperm.slane %v144, 0
    %v147 = vld [vmem:[%s5] sm:$0x1]
    %v149 = vperm.slane %v147, 0
    %vm150 = vcmp.ge.s32.totalorder %v86, 64
    %vm151 = vcmp.lt.s32.totalorder %v86, 96
    %vm152 = vmand %vm150, %vm151
    %v153 = vsel %vm152, 1.0, 0.5
    %v154 = vsel %vm152, 0.0, 0.5
    %v155 = vld [vmem:[#allocation2] sm:$0x3]
    %vm156 = vcmask 261120
    %v157 = vsel %vm156, %v146, 0
    %159 = vmatpush.msra.mxu0 0.0
    %160 = vmatpush.msra.mxu0 0.0
    %161 = vmatpush.msra.mxu0 0.0
    %162 = vmatpush.msra.mxu0 0.0
    %163 = vmatpush.msra.mxu0 0.0
    %164 = vmatpush.msra.mxu0 0.0
    %165 = vmatpush.msra.mxu0 0.0
    %166 = vmatpush.msra.mxu0 0.0
    %167 = vmatpush.msra.mxu0 0.0
    %168 = vmatpush.msra.mxu0 0.0
    %169 = vmatpush.msra.mxu0 0.0
    %170 = vmatpush.msra.mxu0 0.0
    %171 = vmatpush.msra.mxu0 %v142
    %172 = vmatpush.msra.mxu0 %v141
    %173 = vmatpush.msra.mxu0 %v140
    %174 = vmatpush.msra.mxu0 %v139
    %175 = vmatmul.f32.gmra.mxu0 %v157
    %v176 = vpop.f32.mrf.mxu0
    %v177 = vadd.f32 0.0, %v176
    %178 = vdwg.mxu0
    %v179 = vadd.f32 %v155, %v177
    %v180 = vtanh.pop %v179
    %v181 = vmul.f32 %v180, %v153
    %v182 = vadd.f32 %v181, %v154
    %183 = vrot.lane.b32.xlu0 %v149, 32
    %v184 = vpop.permute.xlu0 %183
    %v186 = vmul.f32 %v182, %v184
    %188 = vrot.lane.b32.xlu0 %v182, 64
    %v189 = vpop.permute.xlu0 %188
    %v191 = vmul.f32 %v182, %v189
    %193 = vrot.lane.b32.xlu0 %v191, 32
    %v194 = vpop.permute.xlu0 %193
    %v196 = vadd.f32 %v186, %v194
    %v197 = vtanh.pop %v196
    %199 = vrot.lane.b32.xlu0 %v197, 64
    %v200 = vpop.permute.xlu0 %199
    %v202 = vmul.f32 %v182, %v200
    %vm203 = vcmp.gt.s32.totalorder %v143, 0
    %v204 = vsel %vm203, 1, 0
    %205 = vset.pattern.permute.xlu0 0
    %206 = vperm.xlu0 %205, %v204
    %v207 = vpop.permute.xlu0 %206
    %vm208 = vcmp.eq.s32.totalorder %v207, 1
    %v209 = vsel %vm208, %v202, 0.0
    %211 = vrot.lane.b32.xlu0 %v209, 32
    %v212 = vpop.permute.xlu0 %211
    %vm214 = vcmask 254976
    %215 = vst.msk [vmem:[#allocation3] sm:$0x3] %vm214, %v212
    %216 = vrot.lane.b32.xlu0 %v146, 96
    %v217 = vpop.permute.xlu0 %216
    %v219 = vsel %vm208, %v202, %v217
    %v220 = vsel %vm208, %v196, %v184
    %s221 = scalar_lea.vmem [#allocation2], 2
    %v222 = vld [vmem:[%s221] sm:$0x3]
    %224 = vrot.lane.b32.xlu0 %v219, 32
    %v225 = vpop.permute.xlu0 %224
    %v226 = vsel %vm156, %v225, 0
    %228 = vmatpush.msra.mxu0 0.0
    %229 = vmatpush.msra.mxu0 0.0
    %230 = vmatpush.msra.mxu0 0.0
    %231 = vmatpush.msra.mxu0 0.0
    %232 = vmatpush.msra.mxu0 0.0
    %233 = vmatpush.msra.mxu0 0.0
    %234 = vmatpush.msra.mxu0 0.0
    %235 = vmatpush.msra.mxu0 0.0
    %236 = vmatpush.msra.mxu0 0.0
    %237 = vmatpush.msra.mxu0 0.0
    %238 = vmatpush.msra.mxu0 0.0
    %239 = vmatpush.msra.mxu0 0.0
    %240 = vmatpush.msra.mxu0 %v142
    %241 = vmatpush.msra.mxu0 %v141
    %242 = vmatpush.msra.mxu0 %v140
    %243 = vmatpush.msra.mxu0 %v139
    %244 = vmatmul.f32.gmra.mxu0 %v226
    %v245 = vpop.f32.mrf.mxu0
    %v246 = vadd.f32 0.0, %v245
    %247 = vdwg.mxu0
    %v248 = vadd.f32 %v222, %v246
    %v249 = vtanh.pop %v248
    %v250 = vmul.f32 %v249, %v153
    %v251 = vadd.f32 %v250, %v154
    %v252 = vmul.f32 %v251, %v220
    %254 = vrot.lane.b32.xlu0 %v251, 64
    %v255 = vpop.permute.xlu0 %254
    %v257 = vmul.f32 %v251, %v255
    %259 = vrot.lane.b32.xlu0 %v257, 32
    %v260 = vpop.permute.xlu0 %259
    %v262 = vadd.f32 %v252, %v260
    %v263 = vtanh.pop %v262
    %265 = vrot.lane.b32.xlu0 %v263, 64
    %v266 = vpop.permute.xlu0 %265
    %v268 = vmul.f32 %v251, %v266
    %vm269 = vcmp.gt.s32.totalorder %v143, 1
    %v270 = vsel %vm269, 1, 0
    %271 = vset.pattern.permute.xlu0 0
    %272 = vperm.xlu0 %271, %v270
    %v273 = vpop.permute.xlu0 %272
    %vm274 = vcmp.eq.s32.totalorder %v273, 1
    %v275 = vsel %vm274, %v268, 0.0
    %277 = vrot.lane.b32.xlu0 %v275, 32
    %v278 = vpop.permute.xlu0 %277
    %s280 = scalar_lea.vmem [#allocation3], 2
    %281 = vst.msk [vmem:[%s280] sm:$0x3] %vm214, %v278
    %v282 = vsel %vm274, %v268, %v219
    %v283 = vsel %vm274, %v262, %v220
    %s284 = scalar_lea.vmem [#allocation2], 4
    %v285 = vld [vmem:[%s284] sm:$0x3]
    %287 = vrot.lane.b32.xlu0 %v282, 32
    %v288 = vpop.permute.xlu0 %287
    %v289 = vsel %vm156, %v288, 0
    %291 = vmatpush.msra.mxu0 0.0
    %292 = vmatpush.msra.mxu0 0.0
    %293 = vmatpush.msra.mxu0 0.0
    %294 = vmatpush.msra.mxu0 0.0
    %295 = vmatpush.msra.mxu0 0.0
    %296 = vmatpush.msra.mxu0 0.0
    %297 = vmatpush.msra.mxu0 0.0
    %298 = vmatpush.msra.mxu0 0.0
    %299 = vmatpush.msra.mxu0 0.0
    %300 = vmatpush.msra.mxu0 0.0
    %301 = vmatpush.msra.mxu0 0.0
    %302 = vmatpush.msra.mxu0 0.0
    %303 = vmatpush.msra.mxu0 %v142
    %304 = vmatpush.msra.mxu0 %v141
    %305 = vmatpush.msra.mxu0 %v140
    %306 = vmatpush.msra.mxu0 %v139
    %307 = vmatmul.f32.gmra.mxu0 %v289
    %v308 = vpop.f32.mrf.mxu0
    %v309 = vadd.f32 0.0, %v308
    %310 = vdwg.mxu0
    %v311 = vadd.f32 %v285, %v309
    %v312 = vtanh.pop %v311
    %v313 = vmul.f32 %v312, %v153
    %v314 = vadd.f32 %v313, %v154
    %v315 = vmul.f32 %v314, %v283
    %317 = vrot.lane.b32.xlu0 %v314, 64
    %v318 = vpop.permute.xlu0 %317
    %v320 = vmul.f32 %v314, %v318
    %322 = vrot.lane.b32.xlu0 %v320, 32
    %v323 = vpop.permute.xlu0 %322
    %v325 = vadd.f32 %v315, %v323
    %v326 = vtanh.pop %v325
    %328 = vrot.lane.b32.xlu0 %v326, 64
    %v329 = vpop.permute.xlu0 %328
    %v331 = vmul.f32 %v314, %v329
    %vm332 = vcmp.gt.s32.totalorder %v143, 2
    %v333 = vsel %vm332, 1, 0
    %334 = vset.pattern.permute.xlu0 0
    %335 = vperm.xlu0 %334, %v333
    %v336 = vpop.permute.xlu0 %335
    %vm337 = vcmp.eq.s32.totalorder %v336, 1
    %v338 = vsel %vm337, %v331, 0.0
    %340 = vrot.lane.b32.xlu0 %v338, 32
    %v341 = vpop.permute.xlu0 %340
    %s343 = scalar_lea.vmem [#allocation3], 4
    %344 = vst.msk [vmem:[%s343] sm:$0x3] %vm214, %v341
    %v345 = vsel %vm337, %v331, %v282
    %v346 = vsel %vm337, %v325, %v283
    %s347 = scalar_lea.vmem [#allocation2], 6
    %v348 = vld [vmem:[%s347] sm:$0x3]
    %350 = vrot.lane.b32.xlu0 %v345, 32
    %v351 = vpop.permute.xlu0 %350
    %v352 = vsel %vm156, %v351, 0
    %354 = vmatpush.msra.mxu0 0.0
    %355 = vmatpush.msra.mxu0 0.0
    %356 = vmatpush.msra.mxu0 0.0
    %357 = vmatpush.msra.mxu0 0.0
    %358 = vmatpush.msra.mxu0 0.0
    %359 = vmatpush.msra.mxu0 0.0
    %360 = vmatpush.msra.mxu0 0.0
    %361 = vmatpush.msra.mxu0 0.0
    %362 = vmatpush.msra.mxu0 0.0
    %363 = vmatpush.msra.mxu0 0.0
    %364 = vmatpush.msra.mxu0 0.0
    %365 = vmatpush.msra.mxu0 0.0
    %366 = vmatpush.msra.mxu0 %v142
    %367 = vmatpush.msra.mxu0 %v141
    %368 = vmatpush.msra.mxu0 %v140
    %369 = vmatpush.msra.mxu0 %v139
    %370 = vmatmul.f32.gmra.mxu0 %v352
    %v371 = vpop.f32.mrf.mxu0
    %v372 = vadd.f32 0.0, %v371
    %373 = vdwg.mxu0
    %v374 = vadd.f32 %v348, %v372
    %v375 = vtanh.pop %v374
    %v376 = vmul.f32 %v375, %v153
    %v377 = vadd.f32 %v376, %v154
    %v378 = vmul.f32 %v377, %v346
    %380 = vrot.lane.b32.xlu0 %v377, 64
    %v381 = vpop.permute.xlu0 %380
    %v383 = vmul.f32 %v377, %v381
    %385 = vrot.lane.b32.xlu0 %v383, 32
    %v386 = vpop.permute.xlu0 %385
    %v388 = vadd.f32 %v378, %v386
    %v389 = vtanh.pop %v388
    %391 = vrot.lane.b32.xlu0 %v389, 64
    %v392 = vpop.permute.xlu0 %391
    %v394 = vmul.f32 %v377, %v392
    %vm395 = vcmp.gt.s32.totalorder %v143, 3
    %v396 = vsel %vm395, 1, 0
    %397 = vset.pattern.permute.xlu0 0
    %398 = vperm.xlu0 %397, %v396
    %v399 = vpop.permute.xlu0 %398
    %vm400 = vcmp.eq.s32.totalorder %v399, 1
    %v401 = vsel %vm400, %v394, 0.0
    %403 = vrot.lane.b32.xlu0 %v401, 32
    %v404 = vpop.permute.xlu0 %403
    %s406 = scalar_lea.vmem [#allocation3], 6
    %407 = vst.msk [vmem:[%s406] sm:$0x3] %vm214, %v404
    %v408 = vsel %vm400, %v394, %v345
    %v409 = vsel %vm400, %v388, %v346
    %s410 = scalar_lea.vmem [#allocation2], 8
    %v411 = vld [vmem:[%s410] sm:$0x3]
    %413 = vrot.lane.b32.xlu0 %v408, 32
    %v414 = vpop.permute.xlu0 %413
    %v415 = vsel %vm156, %v414, 0
    %417 = vmatpush.msra.mxu0 0.0
    %418 = vmatpush.msra.mxu0 0.0
    %419 = vmatpush.msra.mxu0 0.0
    %420 = vmatpush.msra.mxu0 0.0
    %421 = vmatpush.msra.mxu0 0.0
    %422 = vmatpush.msra.mxu0 0.0
    %423 = vmatpush.msra.mxu0 0.0
    %424 = vmatpush.msra.mxu0 0.0
    %425 = vmatpush.msra.mxu0 0.0
    %426 = vmatpush.msra.mxu0 0.0
    %427 = vmatpush.msra.mxu0 0.0
    %428 = vmatpush.msra.mxu0 0.0
    %429 = vmatpush.msra.mxu0 %v142
    %430 = vmatpush.msra.mxu0 %v141
    %431 = vmatpush.msra.mxu0 %v140
    %432 = vmatpush.msra.mxu0 %v139
    %433 = vmatmul.f32.gmra.mxu0 %v415
    %v434 = vpop.f32.mrf.mxu0
    %v435 = vadd.f32 0.0, %v434
    %436 = vdwg.mxu0
    %v437 = vadd.f32 %v411, %v435
    %v438 = vtanh.pop %v437
    %v439 = vmul.f32 %v438, %v153
    %v440 = vadd.f32 %v439, %v154
    %v441 = vmul.f32 %v440, %v409
    %443 = vrot.lane.b32.xlu0 %v440, 64
    %v444 = vpop.permute.xlu0 %443
    %v446 = vmul.f32 %v440, %v444
    %448 = vrot.lane.b32.xlu0 %v446, 32
    %v449 = vpop.permute.xlu0 %448
    %v451 = vadd.f32 %v441, %v449
    %v452 = vtanh.pop %v451
    %454 = vrot.lane.b32.xlu0 %v452, 64
    %v455 = vpop.permute.xlu0 %454
    %v457 = vmul.f32 %v440, %v455
    %vm458 = vcmp.gt.s32.totalorder %v143, 4
    %v459 = vsel %vm458, 1, 0
    %460 = vset.pattern.permute.xlu0 0
    %461 = vperm.xlu0 %460, %v459
    %v462 = vpop.permute.xlu0 %461
    %vm463 = vcmp.eq.s32.totalorder %v462, 1
    %v464 = vsel %vm463, %v457, 0.0
    %466 = vrot.lane.b32.xlu0 %v464, 32
    %v467 = vpop.permute.xlu0 %466
    %s469 = scalar_lea.vmem [#allocation3], 8
    %470 = vst.msk [vmem:[%s469] sm:$0x3] %vm214, %v467
    %v471 = vsel %vm463, %v457, %v408
    %v472 = vsel %vm463, %v451, %v409
    %s473 = scalar_lea.vmem [#allocation2], 10
    %v474 = vld [vmem:[%s473] sm:$0x3]
    %476 = vrot.lane.b32.xlu0 %v471, 32
    %v477 = vpop.permute.xlu0 %476
    %v478 = vsel %vm156, %v477, 0
    %480 = vmatpush.msra.mxu0 0.0
    %481 = vmatpush.msra.mxu0 0.0
    %482 = vmatpush.msra.mxu0 0.0
    %483 = vmatpush.msra.mxu0 0.0
    %484 = vmatpush.msra.mxu0 0.0
    %485 = vmatpush.msra.mxu0 0.0
    %486 = vmatpush.msra.mxu0 0.0
    %487 = vmatpush.msra.mxu0 0.0
    %488 = vmatpush.msra.mxu0 0.0
    %489 = vmatpush.msra.mxu0 0.0
    %490 = vmatpush.msra.mxu0 0.0
    %491 = vmatpush.msra.mxu0 0.0
    %492 = vmatpush.msra.mxu0 %v142
    %493 = vmatpush.msra.mxu0 %v141
    %494 = vmatpush.msra.mxu0 %v140
    %495 = vmatpush.msra.mxu0 %v139
    %496 = vmatmul.f32.gmra.mxu0 %v478
    %v497 = vpop.f32.mrf.mxu0
    %v498 = vadd.f32 0.0, %v497
    %499 = vdwg.mxu0
    %v500 = vadd.f32 %v474, %v498
    %v501 = vtanh.pop %v500
    %v502 = vmul.f32 %v501, %v153
    %v503 = vadd.f32 %v502, %v154
    %v504 = vmul.f32 %v503, %v472
    %506 = vrot.lane.b32.xlu0 %v503, 64
    %v507 = vpop.permute.xlu0 %506
    %v509 = vmul.f32 %v503, %v507
    %511 = vrot.lane.b32.xlu0 %v509, 32
    %v512 = vpop.permute.xlu0 %511
    %v514 = vadd.f32 %v504, %v512
    %v515 = vtanh.pop %v514
    %517 = vrot.lane.b32.xlu0 %v515, 64
    %v518 = vpop.permute.xlu0 %517
    %v520 = vmul.f32 %v503, %v518
    %vm521 = vcmp.gt.s32.totalorder %v143, 5
    %v522 = vsel %vm521, 1, 0
    %523 = vset.pattern.permute.xlu0 0
    %524 = vperm.xlu0 %523, %v522
    %v525 = vpop.permute.xlu0 %524
    %vm526 = vcmp.eq.s32.totalorder %v525, 1
    %v527 = vsel %vm526, %v520, 0.0
    %529 = vrot.lane.b32.xlu0 %v527, 32
    %v530 = vpop.permute.xlu0 %529
    %s532 = scalar_lea.vmem [#allocation3], 10
    %533 = vst.msk [vmem:[%s532] sm:$0x3] %vm214, %v530
    %v534 = vsel %vm526, %v520, %v471
    %v535 = vsel %vm526, %v514, %v472
    %s536 = scalar_lea.vmem [#allocation2], 12
    %v537 = vld [vmem:[%s536] sm:$0x3]
    %539 = vrot.lane.b32.xlu0 %v534, 32
    %v540 = vpop.permute.xlu0 %539
    %v541 = vsel %vm156, %v540, 0
    %543 = vmatpush.msra.mxu0 0.0
    %544 = vmatpush.msra.mxu0 0.0
    %545 = vmatpush.msra.mxu0 0.0
    %546 = vmatpush.msra.mxu0 0.0
    %547 = vmatpush.msra.mxu0 0.0
    %548 = vmatpush.msra.mxu0 0.0
    %549 = vmatpush.msra.mxu0 0.0
    %550 = vmatpush.msra.mxu0 0.0
    %551 = vmatpush.msra.mxu0 0.0
    %552 = vmatpush.msra.mxu0 0.0
    %553 = vmatpush.msra.mxu0 0.0
    %554 = vmatpush.msra.mxu0 0.0
    %555 = vmatpush.msra.mxu0 %v142
    %556 = vmatpush.msra.mxu0 %v141
    %557 = vmatpush.msra.mxu0 %v140
    %558 = vmatpush.msra.mxu0 %v139
    %559 = vmatmul.f32.gmra.mxu0 %v541
    %v560 = vpop.f32.mrf.mxu0
    %v561 = vadd.f32 0.0, %v560
    %562 = vdwg.mxu0
    %v563 = vadd.f32 %v537, %v561
    %v564 = vtanh.pop %v563
    %v565 = vmul.f32 %v564, %v153
    %v566 = vadd.f32 %v565, %v154
    %v567 = vmul.f32 %v566, %v535
    %569 = vrot.lane.b32.xlu0 %v566, 64
    %v570 = vpop.permute.xlu0 %569
    %v572 = vmul.f32 %v566, %v570
    %574 = vrot.lane.b32.xlu0 %v572, 32
    %v575 = vpop.permute.xlu0 %574
    %v577 = vadd.f32 %v567, %v575
    %v578 = vtanh.pop %v577
    %580 = vrot.lane.b32.xlu0 %v578, 64
    %v581 = vpop.permute.xlu0 %580
    %v583 = vmul.f32 %v566, %v581
    %vm584 = vcmp.gt.s32.totalorder %v143, 6
    %v585 = vsel %vm584, 1, 0
    %586 = vset.pattern.permute.xlu0 0
    %587 = vperm.xlu0 %586, %v585
    %v588 = vpop.permute.xlu0 %587
    %vm589 = vcmp.eq.s32.totalorder %v588, 1
    %v590 = vsel %vm589, %v583, 0.0
    %592 = vrot.lane.b32.xlu0 %v590, 32
    %v593 = vpop.permute.xlu0 %592
    %s595 = scalar_lea.vmem [#allocation3], 12
    %596 = vst.msk [vmem:[%s595] sm:$0x3] %vm214, %v593
    %v597 = vsel %vm589, %v583, %v534
    %v598 = vsel %vm589, %v577, %v535
    %s599 = scalar_lea.vmem [#allocation2], 14
    %v600 = vld [vmem:[%s599] sm:$0x3]
    %602 = vrot.lane.b32.xlu0 %v597, 32
    %v603 = vpop.permute.xlu0 %602
    %v604 = vsel %vm156, %v603, 0
    %606 = vmatpush.msra.mxu0 0.0
    %607 = vmatpush.msra.mxu0 0.0
    %608 = vmatpush.msra.mxu0 0.0
    %609 = vmatpush.msra.mxu0 0.0
    %610 = vmatpush.msra.mxu0 0.0
    %611 = vmatpush.msra.mxu0 0.0
    %612 = vmatpush.msra.mxu0 0.0
    %613 = vmatpush.msra.mxu0 0.0
    %614 = vmatpush.msra.mxu0 0.0
    %615 = vmatpush.msra.mxu0 0.0
    %616 = vmatpush.msra.mxu0 0.0
    %617 = vmatpush.msra.mxu0 0.0
    %618 = vmatpush.msra.mxu0 %v142
    %619 = vmatpush.msra.mxu0 %v141
    %620 = vmatpush.msra.mxu0 %v140
    %621 = vmatpush.msra.mxu0 %v139
    %622 = vmatmul.f32.gmra.mxu0 %v604
    %v623 = vpop.f32.mrf.mxu0
    %v624 = vadd.f32 0.0, %v623
    %625 = vdwg.mxu0
    %v626 = vadd.f32 %v600, %v624
    %v627 = vtanh.pop %v626
    %v628 = vmul.f32 %v627, %v153
    %v629 = vadd.f32 %v628, %v154
    %v630 = vmul.f32 %v629, %v598
    %632 = vrot.lane.b32.xlu0 %v629, 64
    %v633 = vpop.permute.xlu0 %632
    %v635 = vmul.f32 %v629, %v633
    %637 = vrot.lane.b32.xlu0 %v635, 32
    %v638 = vpop.permute.xlu0 %637
    %v640 = vadd.f32 %v630, %v638
    %v641 = vtanh.pop %v640
    %643 = vrot.lane.b32.xlu0 %v641, 64
    %v644 = vpop.permute.xlu0 %643
    %v646 = vmul.f32 %v629, %v644
    %vm647 = vcmp.gt.s32.totalorder %v143, 7
    %v648 = vsel %vm647, 1, 0
    %649 = vset.pattern.permute.xlu0 0
    %650 = vperm.xlu0 %649, %v648
    %v651 = vpop.permute.xlu0 %650
    %vm652 = vcmp.eq.s32.totalorder %v651, 1
    %v653 = vsel %vm652, %v646, 0.0
    %655 = vrot.lane.b32.xlu0 %v653, 32
    %v656 = vpop.permute.xlu0 %655
    %s658 = scalar_lea.vmem [#allocation3], 14
    %659 = vst.msk [vmem:[%s658] sm:$0x3] %vm214, %v656
    %v660 = vsel %vm652, %v646, %v597
    %v661 = vsel %vm652, %v640, %v598
    %663 = vrot.lane.b32.xlu0 %v660, 32
    %v664 = vpop.permute.xlu0 %663
    %666 = vst.msk [vmem:[#allocation11] sm:$0x3] %vm214, %v664
    %668 = vrot.lane.b32.xlu0 %v661, 96
    %v669 = vpop.permute.xlu0 %668
    %671 = vst.msk [vmem:[#allocation13] sm:$0x3] %vm214, %v669
    %v672 = vld [vmem:[#allocation3] ss:$2 sm:$0xff]
    %s673 = scalar_lea.vmem [#allocation3], 1
    %v674 = vld [vmem:[%s673] ss:$2 sm:$0xff]
    %675 = vst.msk [vmem:[#allocation10] sm:$0xff] %vm156, %v672
    %676 = vst.msk [vmem:[#allocation10 + $0x8] sm:$0xff] %vm156, %v674
    %v677 = vld [vmem:[#allocation9] sm:$0xff]
    %v678 = vld [vmem:[#allocation9 + $0x8] sm:$0xff]
    %v679 = vld [vmem:[#allocation9 + $0x10] sm:$0xff]
    %v680 = vld [vmem:[#allocation9 + $0x18] sm:$0xff]
    %v681 = vld [vmem:[%s7] sm:$0x1]
    %v683 = vperm.slane %v681, 0
    %v686 = vsel %vm156, %v672, 0
    %v689 = vsel %vm156, %v674, 0
    %691 = vmatpush.msra.mxu0 0.0
    %692 = vmatpush.msra.mxu0 0.0
    %693 = vmatpush.msra.mxu0 0.0
    %694 = vmatpush.msra.mxu0 0.0
    %695 = vmatpush.msra.mxu0 0.0
    %696 = vmatpush.msra.mxu0 0.0
    %697 = vmatpush.msra.mxu0 0.0
    %698 = vmatpush.msra.mxu0 0.0
    %699 = vmatpush.msra.mxu0 0.0
    %700 = vmatpush.msra.mxu0 0.0
    %701 = vmatpush.msra.mxu0 0.0
    %702 = vmatpush.msra.mxu0 0.0
    %703 = vmatpush.msra.mxu0 %v680
    %704 = vmatpush.msra.mxu0 %v679
    %705 = vmatpush.msra.mxu0 %v678
    %706 = vmatpush.msra.mxu0 %v677
    %707 = vmatmul.f32.gmra.mxu0 %v686
    %v708 = vpop.f32.mrf.mxu0
    %v709 = vadd.f32 %v683, %v708
    %710 = vmatmul.f32.gmra.mxu0 %v689
    %v711 = vpop.f32.mrf.mxu0
    %v712 = vadd.f32 %v683, %v711
    %713 = vdwg.mxu0
    %714 = vst [vmem:[#allocation14] sm:$0xff] %v709
    %715 = vst [vmem:[#allocation14 + $0x8] sm:$0xff] %v712
    // Predicated region
    $region46: #{tpu_custom_call.1} parent=1 // pred_check
      _
    $region47: #{tpu_custom_call.1} parent=1 // pred_check_branch
      %717 = sbr.rel (0) target = $region49
    $region48: #{tpu_custom_call.1} parent=1 // pred_region
      %719 = vsyncadd [#allocation6], 0
      %s720 = sshll.u32 [#allocation10], 4
      %s721 = int_to_ptr.vmem [resolvable:$true] %s720
      %s722 = sshll.u32 %s8, 4
      %s723 = int_to_ptr.hbm [resolvable:$true] %s722
      %728 = dma.vmem_to_hbm [thread:$0]  %s721, 256, %s723, [#allocation6], 128, 128, 8
    $region49: #{tpu_custom_call.1} parent=1 // pred_fallthru
      _
    // Predicated region
    $region50: #{tpu_custom_call.1} parent=1 // pred_check
      _
    $region51: #{tpu_custom_call.1} parent=1 // pred_check_branch
      %730 = sbr.rel (0) target = $region53
    $region52: #{tpu_custom_call.1} parent=1 // pred_region
      %732 = vsyncadd [#allocation12], 0
      %s734 = sshll.u32 [#allocation11], 4
      %s735 = int_to_ptr.vmem [resolvable:$true] %s734
      %s736 = sshll.u32 %s9, 4
      %s737 = int_to_ptr.hbm [resolvable:$true] %s736
      %739 = dma.vmem_to_hbm [thread:$0]  %s735, 32, %s737, [#allocation12]
    $region53: #{tpu_custom_call.1} parent=1 // pred_fallthru
      _
    // Predicated region
    $region54: #{tpu_custom_call.1} parent=1 // pred_check
      _
    $region55: #{tpu_custom_call.1} parent=1 // pred_check_branch
      %741 = sbr.rel (0) target = $region57
    $region56: #{tpu_custom_call.1} parent=1 // pred_region
      %743 = vsyncadd [#allocation12], 0
      %s745 = sshll.u32 [#allocation13], 4
      %s746 = int_to_ptr.vmem [resolvable:$true] %s745
      %s747 = sshll.u32 %s10, 4
      %s748 = int_to_ptr.hbm [resolvable:$true] %s747
      %750 = dma.vmem_to_hbm [thread:$0]  %s746, 32, %s748, [#allocation12]
    $region57: #{tpu_custom_call.1} parent=1 // pred_fallthru
      _
    // Predicated region
    $region58: #{tpu_custom_call.1} parent=1 // pred_check
      _
    $region59: #{tpu_custom_call.1} parent=1 // pred_check_branch
      %752 = sbr.rel (0) target = $region61
    $region60: #{tpu_custom_call.1} parent=1 // pred_region
      %754 = vsyncadd [#allocation15], 0
      %s755 = sshll.u32 [#allocation14], 4
      %s756 = int_to_ptr.vmem [resolvable:$true] %s755
      %s757 = sshll.u32 %s11, 4
      %s758 = int_to_ptr.hbm [resolvable:$true] %s757
      %763 = dma.vmem_to_hbm [thread:$0]  %s756, 256, %s758, [#allocation15], 128, 128, 8
    $region61: #{tpu_custom_call.1} parent=1 // pred_fallthru
      _
    // Predicated region
    $region62: #{tpu_custom_call.1} parent=1 // pred_check
      _
    $region63: #{tpu_custom_call.1} parent=1 // pred_check_branch
      %765 = sbr.rel (0) target = $region65
    $region64: #{tpu_custom_call.1} parent=1 // pred_region
      %767 = dma.done [#allocation6], 256
    $region65: #{tpu_custom_call.1} parent=1 // pred_fallthru
      _
    // Predicated region
    $region66: #{tpu_custom_call.1} parent=1 // pred_check
      _
    $region67: #{tpu_custom_call.1} parent=1 // pred_check_branch
      %769 = sbr.rel (0) target = $region69
    $region68: #{tpu_custom_call.1} parent=1 // pred_region
      %771 = dma.done [#allocation12], 32
    $region69: #{tpu_custom_call.1} parent=1 // pred_fallthru
      _
    // Predicated region
    $region70: #{tpu_custom_call.1} parent=1 // pred_check
      _
    $region71: #{tpu_custom_call.1} parent=1 // pred_check_branch
      %773 = sbr.rel (0) target = $region73
    $region72: #{tpu_custom_call.1} parent=1 // pred_region
      %775 = dma.done [#allocation12], 32
    $region73: #{tpu_custom_call.1} parent=1 // pred_fallthru
      _
    // Predicated region
    $region74: #{tpu_custom_call.1} parent=1 // pred_check
      _
    $region75: #{tpu_custom_call.1} parent=1 // pred_check_branch
      %777 = sbr.rel (0) target = $region77
    $region76: #{tpu_custom_call.1} parent=1 // pred_region
      %779 = dma.done [#allocation15], 256
    $region77: #{tpu_custom_call.1} parent=1 // pred_fallthru
      _
    %780 = vsyncpa [#allocation5], 1
    %781 = vsyncpa [#allocation8], 1
    %782 = vsyncpa [#allocation6], 1
    %783 = vsyncpa [#allocation12], 1
    %784 = vsyncpa [#allocation15], 1

</llo_original>
